<compile_context>
chip_gen: v7x
topology: tpu7x:2x2x1
jax: 0.10.0
libtpu: 0.0.40
codegen_flags: <defaults>
</compile_context>

<pallas_src>
import functools

import jax
import jax.numpy as jnp
from jax.experimental import pallas as pl
from jax.experimental.pallas import tpu as pltpu


_LANE = 128


def _dim(shape):
    d = 1
    for s in shape:
        d *= s
    return d


def _round_up(x, m):
    return (x + m - 1) // m * m


def normalize_cw(W, b1, b2):
    """Exact reproduction of N2CW.normalize_cw, including the original's
    broadcasting quirk: for dim_out > 1 `sums` becomes (D, D, 1), which only
    yields meaningful semantics when dim_out == 1 or
    dim_out == module_size == batch (guarded explicitly in pack_n2cw_params)."""
    A = jnp.abs(W)                                        # (D, M, 1)
    sums = A.sum(axis=1) + jnp.abs(b1) + jnp.abs(b2)
    k = A.shape[1] + 2
    Wn = (1.0 / k + A) / (1.0 + sums)
    b1n = (1.0 / k + jnp.abs(b1)) / (1.0 + sums)
    b2n = (1.0 / k + jnp.abs(b2)) / (1.0 + sums)
    return Wn, b1n, b2n


def _vmem_capacity_bytes():
    try:
        return int(pltpu.get_tpu_info().vmem_capacity_bytes)
    except Exception:
        return 64 << 20          # conservative (v7x-sized) fallback


def _choose_tb(B):
    """Batch rows per grid step: full B when small / not 8-aligned, otherwise
    the largest multiple-of-8 divisor <= 512."""
    if B % 8 != 0 or B <= 512:
        return B
    for tb in range(512, 7, -8):
        if B % tb == 0:
            return tb
    return B


def _choose_td(d_pad, msize, din, tb, w_itemsize, x_itemsize, vmem_limit):
    """Output units handled per grid step along the (padded) D axis."""
    if d_pad % _LANE != 0:
        # Small / unpadded D (< 128): single full-axis block.
        return d_pad

    budget = int(vmem_limit * 0.7)        # leave headroom for compiler scratch

    def footprint(td):
        w = 2 * din * td * msize * w_itemsize     # weight block, double-buffered
        p = 2 * 2 * td * msize * 4                # bias1 + bound*Wn block
        c = 2 * tb * td * 4                       # c block
        o = 2 * tb * td * 4                       # output block
        x = 2 * tb * din * x_itemsize             # x block
        inter = 2 * tb * td * msize * 4           # acc / h f32 intermediates
        return w + p + c + o + x + inter

    best = None
    for cand in range(_LANE, d_pad + 1, _LANE):
        if d_pad % cand:
            continue
        if footprint(cand) > budget:
            continue
        if cand == d_pad and d_pad >= 2 * _LANE and best is not None:
            # Prefer G >= 2 so the 'parallel' D axis can split across the
            # two v7x TensorCores.
            continue
        best = cand
    if best is None:
        # Even the 128-wide tile overshoots the budget: take the smallest
        # aligned tile anyway - never the whole weight as one block.
        # TODO(synk): add a Din reduction grid axis for very large Din*M.
        best = _LANE
    return best


def _pack_units(arr, g, td):
    """(D_pad, R, M) -> (G, R, M*TD); packed column m*TD + t holds output unit
    d = g*TD + t, mixture component m.  Matches the kernel's lane slicing, and
    makes each grid step's weight DMA one contiguous slab."""
    d_pad, r, m = arr.shape
    a = arr.reshape(g, td, r, m)               # (G, TD, R, M)
    a = jnp.transpose(a, (0, 2, 3, 1))         # (G, R, M, TD)
    return a.reshape(g, r, m * td)


def _n2cw_kernel(td, msize, afunc, x_ref, w1_ref, pb_ref, c_ref, o_ref):
    """One grid step: TB batch rows x TD output units.

    x_ref : (TB, Din)    compute dtype (bf16/f32)
    w1_ref: (Din, M*TD)  compute dtype (leading G axis squeezed away)
    pb_ref: (2, M*TD)    f32; row 0 = packed bias1, row 1 = packed bound*Wn
    c_ref : (TB, TD)     f32; bound * (b1n - b2n) per (batch, unit)
    o_ref : (TB, TD)     f32 lane-dense output block
    """
    acc = jnp.dot(x_ref[...], w1_ref[...],
                  preferred_element_type=jnp.float32)      # (TB, M*TD)  MXU
    pb = pb_ref[...]
    # Activation input (acc + bias1) is f32, so the bf16 path's only error
    # source is the rounding of the x / weight1 operands.
    # TODO(synk): for very large B on v6e/v7x, compute the tanh in bf16 to
    # double EUP throughput (keep f32 on v5e - no bf16 EUP).
    h = afunc(acc + pb[0:1, :])                            # (TB, M*TD) f32
    wn = pb[1:2, :]
    pre = c_ref[...]
    # Convex reduction over M, fused with the wn scale (no full-width hw
    # intermediate): M static contiguous lane-slice FMAs on the VPU.
    for m in range(msize):
        s = slice(m * td, (m + 1) * td)
        pre = pre + h[:, s] * wn[:, s]
    o_ref[...] = pre.astype(o_ref.dtype)


def pack_n2cw_params(params, bound, batch, compute_dtype=jnp.bfloat16,
                     vmem_limit_bytes=None):
    """Parameter-only preprocessing.  Call ONCE and reuse across forward steps:
    the repack touches the full weight in HBM, so hoisting it matters for a
    memory-bound forward."""
    w1 = params["weight1"]
    D, Din, M = w1.shape
    # The original normalize_cw broadcasting only produces meaningful
    # semantics for these configurations - guard explicitly.
    assert D == 1 or (D == M and batch == D), (
        "N2CW normalize_cw broadcasting requires dim_out == 1 or "
        "dim_out == module_size == batch")

    Wn, b1n, b2n = normalize_cw(params["weight2"], params["bias2"],
                                params["bias2neg"])

    if vmem_limit_bytes is None:
        vmem_limit_bytes = (_vmem_capacity_bytes() * 3) // 4

    # Pad D to a lane multiple only when it is large enough that masked
    # partial stores / unaligned tiles matter; tiny D stays a full-axis block.
    d_pad = _round_up(D, _LANE) if D > _LANE else D
    tb = _choose_tb(batch)
    itemsize = jnp.dtype(compute_dtype).itemsize
    td = _choose_td(d_pad, M, Din, tb, itemsize, itemsize, vmem_limit_bytes)
    g = d_pad // td

    def pad_d(a):
        if d_pad == D:
            return a
        return jnp.pad(a, ((0, d_pad - D),) + ((0, 0),) * (a.ndim - 1))

    # TODO(synk): on v7x, stream weight1 in fp8 (scales folded into wn/bias1)
    # for another 2x cut of the dominant HBM stream.
    w1p = _pack_units(pad_d(w1).astype(compute_dtype), g, td)       # (G, Din, M*TD)
    b1_row = params["bias1"]                                        # (D, 1, M)
    wn_row = jnp.transpose(bound * Wn, (0, 2, 1))                   # (D, 1, M)
    pbp = _pack_units(
        pad_d(jnp.concatenate([b1_row, wn_row], axis=1)).astype(jnp.float32),
        g, td)                                                       # (G, 2, M*TD)
    # Combined bias, bound folded in, laid out (B, D) to match the output.
    c_bd = jnp.transpose(
        jnp.broadcast_to(bound * (b1n - b2n), (D, batch, 1))[:, :, 0]
    ).astype(jnp.float32)                                            # (B, D)
    c_bd = jnp.pad(c_bd, ((0, 0), (0, d_pad - D)))

    packed = dict(w1=w1p, pb=pbp, c=c_bd)
    meta = dict(D=D, d_pad=d_pad, Din=Din, M=M, td=td, g=g, tb=tb, batch=batch,
                compute_dtype=compute_dtype,
                vmem_limit_bytes=int(vmem_limit_bytes))
    return packed, meta


def n2cw_forward_packed(x, packed, meta, afunc=jnp.tanh):
    B = x.shape[0]
    assert B == meta["batch"]
    D, d_pad, Din, M = meta["D"], meta["d_pad"], meta["Din"], meta["M"]
    td, g, tb = meta["td"], meta["g"], meta["tb"]
    gb = B // tb

    xf = x.reshape(B, -1).astype(meta["compute_dtype"])              # x.view(B, -1)
    assert xf.shape[1] == Din

    kernel = functools.partial(_n2cw_kernel, td, M, afunc)
    out = pl.pallas_call(
        kernel,
        out_shape=jax.ShapeDtypeStruct((B, d_pad), jnp.float32),
        grid_spec=pltpu.PrefetchScalarGridSpec(
            num_scalar_prefetch=0,
            grid=(gb, g),
            in_specs=[
                pl.BlockSpec((tb, Din), lambda b, j: (b, 0)),            # x
                pl.BlockSpec((pl.Squeezed(), Din, M * td),
                             lambda b, j: (j, 0, 0)),                    # weight1
                pl.BlockSpec((pl.Squeezed(), 2, M * td),
                             lambda b, j: (j, 0, 0)),                    # bias1 / wn
                pl.BlockSpec((tb, td), lambda b, j: (b, j)),             # c
            ],
            out_specs=pl.BlockSpec((tb, td), lambda b, j: (b, j)),
        ),
        compiler_params=pltpu.CompilerParams(
            dimension_semantics=("parallel", "parallel"),
            vmem_limit_bytes=meta["vmem_limit_bytes"],
        ),
    )(xf, packed["w1"], packed["pb"], packed["c"])
    return out[:, :D]


def n2cw_forward(x, params, bound, afunc=jnp.tanh,
                 compute_dtype=jnp.bfloat16, vmem_limit_bytes=None):
    """Convenience wrapper (packs params per call; prefer pack_n2cw_params +
    n2cw_forward_packed when parameters are static across steps)."""
    packed, meta = pack_n2cw_params(params, bound, x.shape[0],
                                    compute_dtype, vmem_limit_bytes)
    return n2cw_forward_packed(x, packed, meta, afunc=afunc)


def n2cw_reference(x, params, bound, afunc=jnp.tanh):
    """Pure-JAX reference (mirrors the PyTorch forward 1:1)."""
    xf = x.reshape(x.shape[0], -1)
    out = afunc(jnp.matmul(xf, params["weight1"]) + params["bias1"])   # (D, B, M)
    Wn, b1n, b2n = normalize_cw(params["weight2"], params["bias2"],
                                params["bias2neg"])
    out = bound * (jnp.matmul(out, Wn) + b1n - b2n)                    # (D, B, 1)
    return jnp.transpose(out[:, :, 0], (1, 0))                         # (B, D)


def init_params(key, shape_in, dim_out, module_size, zero=False, xavier_init=False):
    """Deterministic synthetic init following N2CW.__init__ (non-zero branch)."""
    assert module_size > 1
    dim_in = _dim(shape_in)
    std = 1.0 / dim_in ** 0.5
    if xavier_init:
        std = 6 ** 0.5 / (dim_in + module_size)
    k1, k2 = jax.random.split(key)
    weight1 = jax.random.uniform(k1, (dim_out, dim_in, module_size), jnp.float32, -std, std)
    bias1 = jax.random.uniform(k2, (dim_out, 1, module_size), jnp.float32, -std, std)
    if zero:
        weight1 = jnp.zeros_like(weight1)
        bias1 = jnp.zeros_like(bias1)
        fill = 0.0
    else:
        fill = 0.05
    weight2 = jnp.full((dim_out, module_size, 1), fill, jnp.float32)
    bias2 = jnp.full((dim_out, 1, 1), fill, jnp.float32)
    bias2neg = jnp.full((dim_out, 1, 1), fill, jnp.float32)
    return dict(weight1=weight1, bias1=bias1, weight2=weight2, bias2=bias2,
                bias2neg=bias2neg)


if __name__ == "__main__":
    key = jax.random.PRNGKey(0)

    # --- Config A: dim_out == module_size == batch (the only >1-dim_out
    # configuration where the original normalize_cw broadcasting is defined).
    B, shape_in, dim_out, module_size, bound = 8, (4, 8), 8, 8, 2.0
    kx, kp, key = jax.random.split(key, 3)
    x = jax.random.normal(kx, (B,) + shape_in, jnp.float32)
    params = init_params(kp, shape_in, dim_out, module_size)
    ref = n2cw_reference(x, params, bound)

    # f32 streaming: bit-faithful to the PyTorch forward.
    out_f32 = jax.block_until_ready(
        n2cw_forward(x, params, bound, compute_dtype=jnp.float32))
    assert out_f32.shape == (B, dim_out), out_f32.shape
    assert jnp.allclose(out_f32, ref, atol=1e-5, rtol=1e-5), (out_f32, ref)

    # Default bf16 weight/x streaming with the parameter repack hoisted
    # (pack once, reuse) - f32 accumulation + f32 activation, so the only
    # delta vs. the f32 reference is bf16 operand rounding.
    packed, meta = pack_n2cw_params(params, bound, B)
    out_bf16 = jax.block_until_ready(n2cw_forward_packed(x, packed, meta))
    assert out_bf16.shape == (B, dim_out), out_bf16.shape
    assert jnp.allclose(out_bf16, ref, atol=5e-2, rtol=5e-2), (out_bf16, ref)

    # --- Config B: dim_out == 1 path.
    B1, shape_in1, M1, bound1 = 4, (2, 8), 8, 1.5
    kx1, kp1 = jax.random.split(key)
    x1 = jax.random.normal(kx1, (B1,) + shape_in1, jnp.float32)
    params1 = init_params(kp1, shape_in1, 1, M1)
    ref1 = n2cw_reference(x1, params1, bound1)
    out1 = jax.block_until_ready(
        n2cw_forward(x1, params1, bound1, compute_dtype=jnp.float32))
    assert out1.shape == (B1, 1), out1.shape
    assert jnp.allclose(out1, ref1, atol=1e-5, rtol=1e-5), (out1, ref1)

    print("KERNEL_OK")
</pallas_src>

<mosaic_0001>
module attributes {stable_mosaic.version = 11 : i64} {
  func.func @_n2cw_kernel(%arg0: i32, %arg1: i32, %arg2: memref<8x32xf32, #tpu.memory_space<vmem>>, %arg3: memref<1x32x64xf32, #tpu.memory_space<vmem>>, %arg4: memref<1x2x64xf32, #tpu.memory_space<vmem>>, %arg5: memref<8x8xf32, #tpu.memory_space<vmem>>, %arg6: memref<8x8xf32, #tpu.memory_space<vmem>>) attributes {dimension_semantics = [#tpu.dimension_semantics<parallel>, #tpu.dimension_semantics<parallel>], iteration_bounds = array<i64: 1, 1>, scalar_prefetch = 0 : i64, scratch_operands = 0 : i64, tpu.core_type = #tpu.core_type<tc>, window_params = [{transform_indices = @transform_0, window_bounds = array<i64: 8, 32>}, {transform_indices = @transform_1, window_bounds = array<i64: 1, 32, 64>}, {transform_indices = @transform_2, window_bounds = array<i64: 1, 2, 64>}, {transform_indices = @transform_3, window_bounds = array<i64: 8, 8>}, {transform_indices = @transform_4, window_bounds = array<i64: 8, 8>}]} {
    %c0 = arith.constant 0 : index
    %c0_0 = arith.constant 0 : index
    %0 = vector.load %arg2[%c0, %c0_0] : memref<8x32xf32, #tpu.memory_space<vmem>>, vector<8x32xf32>
    %c0_1 = arith.constant 0 : index
    %c0_2 = arith.constant 0 : index
    %c0_3 = arith.constant 0 : index
    %1 = vector.load %arg3[%c0_1, %c0_2, %c0_3] : memref<1x32x64xf32, #tpu.memory_space<vmem>>, vector<1x32x64xf32>
    %2 = vector.shape_cast %1 : vector<1x32x64xf32> to vector<32x64xf32>
    %cst = arith.constant dense<0.000000e+00> : vector<8x64xf32>
    %3 = tpu.matmul %0, %2, %cst {dimension_numbers = #tpu.dot_dimension_numbers<[1], [0], [0], [1], [0, 0, 1, 1], [], []>} : vector<8x32xf32>, vector<32x64xf32>, vector<8x64xf32> -> vector<8x64xf32>
    %c0_4 = arith.constant 0 : index
    %c0_5 = arith.constant 0 : index
    %c0_6 = arith.constant 0 : index
    %4 = vector.load %arg4[%c0_4, %c0_5, %c0_6] : memref<1x2x64xf32, #tpu.memory_space<vmem>>, vector<1x2x64xf32>
    %5 = vector.shape_cast %4 : vector<1x2x64xf32> to vector<2x64xf32>
    %6 = vector.extract_strided_slice %5 {offsets = [0, 0], sizes = [1, 64], strides = [1, 1]} : vector<2x64xf32> to vector<1x64xf32>
    %7 = vector.broadcast %6 : vector<1x64xf32> to vector<8x64xf32>
    %8 = arith.addf %3, %7 : vector<8x64xf32>
    %9 = math.tanh %8 : vector<8x64xf32>
    %10 = vector.extract_strided_slice %5 {offsets = [1, 0], sizes = [1, 64], strides = [1, 1]} : vector<2x64xf32> to vector<1x64xf32>
    %c0_7 = arith.constant 0 : index
    %c0_8 = arith.constant 0 : index
    %11 = vector.load %arg5[%c0_7, %c0_8] : memref<8x8xf32, #tpu.memory_space<vmem>>, vector<8x8xf32>
    %12 = vector.extract_strided_slice %9 {offsets = [0, 0], sizes = [8, 8], strides = [1, 1]} : vector<8x64xf32> to vector<8x8xf32>
    %13 = vector.extract_strided_slice %10 {offsets = [0, 0], sizes = [1, 8], strides = [1, 1]} : vector<1x64xf32> to vector<1x8xf32>
    %14 = vector.broadcast %13 : vector<1x8xf32> to vector<8x8xf32>
    %15 = arith.mulf %12, %14 : vector<8x8xf32>
    %16 = arith.addf %11, %15 : vector<8x8xf32>
    %17 = vector.extract_strided_slice %9 {offsets = [0, 8], sizes = [8, 8], strides = [1, 1]} : vector<8x64xf32> to vector<8x8xf32>
    %18 = vector.extract_strided_slice %10 {offsets = [0, 8], sizes = [1, 8], strides = [1, 1]} : vector<1x64xf32> to vector<1x8xf32>
    %19 = vector.broadcast %18 : vector<1x8xf32> to vector<8x8xf32>
    %20 = arith.mulf %17, %19 : vector<8x8xf32>
    %21 = arith.addf %16, %20 : vector<8x8xf32>
    %22 = vector.extract_strided_slice %9 {offsets = [0, 16], sizes = [8, 8], strides = [1, 1]} : vector<8x64xf32> to vector<8x8xf32>
    %23 = vector.extract_strided_slice %10 {offsets = [0, 16], sizes = [1, 8], strides = [1, 1]} : vector<1x64xf32> to vector<1x8xf32>
    %24 = vector.broadcast %23 : vector<1x8xf32> to vector<8x8xf32>
    %25 = arith.mulf %22, %24 : vector<8x8xf32>
    %26 = arith.addf %21, %25 : vector<8x8xf32>
    %27 = vector.extract_strided_slice %9 {offsets = [0, 24], sizes = [8, 8], strides = [1, 1]} : vector<8x64xf32> to vector<8x8xf32>
    %28 = vector.extract_strided_slice %10 {offsets = [0, 24], sizes = [1, 8], strides = [1, 1]} : vector<1x64xf32> to vector<1x8xf32>
    %29 = vector.broadcast %28 : vector<1x8xf32> to vector<8x8xf32>
    %30 = arith.mulf %27, %29 : vector<8x8xf32>
    %31 = arith.addf %26, %30 : vector<8x8xf32>
    %32 = vector.extract_strided_slice %9 {offsets = [0, 32], sizes = [8, 8], strides = [1, 1]} : vector<8x64xf32> to vector<8x8xf32>
    %33 = vector.extract_strided_slice %10 {offsets = [0, 32], sizes = [1, 8], strides = [1, 1]} : vector<1x64xf32> to vector<1x8xf32>
    %34 = vector.broadcast %33 : vector<1x8xf32> to vector<8x8xf32>
    %35 = arith.mulf %32, %34 : vector<8x8xf32>
    %36 = arith.addf %31, %35 : vector<8x8xf32>
    %37 = vector.extract_strided_slice %9 {offsets = [0, 40], sizes = [8, 8], strides = [1, 1]} : vector<8x64xf32> to vector<8x8xf32>
    %38 = vector.extract_strided_slice %10 {offsets = [0, 40], sizes = [1, 8], strides = [1, 1]} : vector<1x64xf32> to vector<1x8xf32>
    %39 = vector.broadcast %38 : vector<1x8xf32> to vector<8x8xf32>
    %40 = arith.mulf %37, %39 : vector<8x8xf32>
    %41 = arith.addf %36, %40 : vector<8x8xf32>
    %42 = vector.extract_strided_slice %9 {offsets = [0, 48], sizes = [8, 8], strides = [1, 1]} : vector<8x64xf32> to vector<8x8xf32>
    %43 = vector.extract_strided_slice %10 {offsets = [0, 48], sizes = [1, 8], strides = [1, 1]} : vector<1x64xf32> to vector<1x8xf32>
    %44 = vector.broadcast %43 : vector<1x8xf32> to vector<8x8xf32>
    %45 = arith.mulf %42, %44 : vector<8x8xf32>
    %46 = arith.addf %41, %45 : vector<8x8xf32>
    %47 = vector.extract_strided_slice %9 {offsets = [0, 56], sizes = [8, 8], strides = [1, 1]} : vector<8x64xf32> to vector<8x8xf32>
    %48 = vector.extract_strided_slice %10 {offsets = [0, 56], sizes = [1, 8], strides = [1, 1]} : vector<1x64xf32> to vector<1x8xf32>
    %49 = vector.broadcast %48 : vector<1x8xf32> to vector<8x8xf32>
    %50 = arith.mulf %47, %49 : vector<8x8xf32>
    %51 = arith.addf %46, %50 : vector<8x8xf32>
    %c0_9 = arith.constant 0 : index
    %c0_10 = arith.constant 0 : index
    %52 = vector.load %arg6[%c0_9, %c0_10] : memref<8x8xf32, #tpu.memory_space<vmem>>, vector<8x8xf32>
    tpu.vector_store %arg6[%c0_9, %c0_10], %51 {strides = array<i32>} : memref<8x8xf32, #tpu.memory_space<vmem>>, vector<8x8xf32>,
    return
  }
  func.func @transform_0(%arg0: i32, %arg1: i32) -> (i32, i32) {
    %c0_i32 = arith.constant 0 : i32
    %c0_i32_0 = arith.constant 0 : i32
    return %arg0, %c0_i32 : i32, i32
  }
  func.func @transform_1(%arg0: i32, %arg1: i32) -> (i32, i32, i32) {
    %c0_i32 = arith.constant 0 : i32
    %c0_i32_0 = arith.constant 0 : i32
    %c0_i32_1 = arith.constant 0 : i32
    return %arg1, %c0_i32, %c0_i32_0 : i32, i32, i32
  }
  func.func @transform_2(%arg0: i32, %arg1: i32) -> (i32, i32, i32) {
    %c0_i32 = arith.constant 0 : i32
    %c0_i32_0 = arith.constant 0 : i32
    %c0_i32_1 = arith.constant 0 : i32
    return %arg1, %c0_i32, %c0_i32_0 : i32, i32, i32
  }
  func.func @transform_3(%arg0: i32, %arg1: i32) -> (i32, i32) {
    %c0_i32 = arith.constant 0 : i32
    return %arg0, %arg1 : i32, i32
  }
  func.func @transform_4(%arg0: i32, %arg1: i32) -> (i32, i32) {
    %c0_i32 = arith.constant 0 : i32
    return %arg0, %arg1 : i32, i32
  }
}

</mosaic_0001>

<llo_original>
// kernel: tpu_custom_call.1
$region0: #{tpu_custom_call.1}
  #allocation0 [shape = 'u32[]', space=smem, size = 0x4, offset = 0x4, fixed_abs, tag = 'smem constant byte address 0x4 - core index']
  #allocation1 [shape = 'u32[144,128]{1,0:T(1,128)}', space=vmem, size = 0x12000, scoped, tag = 'internal scratch']
  %s0 = inlined_call_operand.hbm [shape: f32[8,32], index: 0, kind: input, shape index: {}]
  %s1 = inlined_call_operand.hbm [shape: f32[1,32,64], index: 1, kind: input, shape index: {}]
  %s2 = inlined_call_operand.vmem [shape: f32[1,2,64], index: 2, kind: input, shape index: {}]
  %s3 = inlined_call_operand.vmem [shape: f32[8,8], index: 3, kind: input, shape index: {}]
  %s4 = inlined_call_operand.hbm [shape: f32[8,8], index: 4, kind: output, shape index: {}]
  %s5 = sld [smem:[#allocation0]]
  $region34: #{tpu_custom_call.1} parent=0
    _
  %s7 = ssub.s32 1, %s5
  %s8 = scalar_select 0, %s7, %s5
  $region1: #{tpu_custom_call.1} parent=0
    #allocation2 [shape = 'u8[4096]{0}', space=vmem, size = 0x1000, scoped, tag = 'input window, operand 0, single buffered']
    #allocation3 [shape = 's32[1]{0}', space=sflag, size = 0x4, scoped, tag = 'scoped memory for tpu_custom_call.1']
    #allocation4 [shape = 's32[1]{0}', space=sflag, size = 0x4, scoped, tag = 'scoped memory for tpu_custom_call.1']
    #allocation5 [shape = 'u8[16384]{0}', space=vmem, size = 0x4000, scoped, tag = 'input window, operand 1, single buffered']
    #allocation6 [shape = 's32[1]{0}', space=sflag, size = 0x4, scoped, tag = 'scoped memory for tpu_custom_call.1']
    #allocation7 [shape = 'u8[4096]{0}', space=vmem, size = 0x1000, scoped, tag = 'output window, operand 0, single buffered']
    %9 = vsyncpa [#allocation3], 0
    %10 = vsyncpa [#allocation6], 0
    %11 = vsyncpa [#allocation4], 0
    // Predicated region
    $region2: #{tpu_custom_call.1} parent=1 // pred_check
      _
    $region3: #{tpu_custom_call.1} parent=1 // pred_check_branch
      %13 = sbr.rel (0) target = $region5
    $region4: #{tpu_custom_call.1} parent=1 // pred_region
      %s15 = ssub.s32 128, 128
      %16 = vsyncadd [#allocation3], %s15
      %s18 = sshll.u32 [#allocation2], 4
      %s19 = int_to_ptr.vmem [resolvable:$true] %s18
      %21 = dma.hbm_to_vmem [thread:$0]  %s0, 128, %s19, [#allocation3]
    $region5: #{tpu_custom_call.1} parent=1 // pred_fallthru
      _
    // Predicated region
    $region6: #{tpu_custom_call.1} parent=1 // pred_check
      _
    $region7: #{tpu_custom_call.1} parent=1 // pred_check_branch
      %23 = sbr.rel (0) target = $region9
    $region8: #{tpu_custom_call.1} parent=1 // pred_region
      %s25 = ssub.s32 512, 512
      %26 = vsyncadd [#allocation6], %s25
      %s27 = sshll.u32 [#allocation5], 4
      %s28 = int_to_ptr.vmem [resolvable:$true] %s27
      %33 = dma.hbm_to_vmem [thread:$0]  %s1, 512, %s28, [#allocation6], 128, 128, 8
    $region9: #{tpu_custom_call.1} parent=1 // pred_fallthru
      _
    // Predicated region
    $region10: #{tpu_custom_call.1} parent=1 // pred_check
      _
    $region11: #{tpu_custom_call.1} parent=1 // pred_check_branch
      %35 = sbr.rel (0) target = $region13
    $region12: #{tpu_custom_call.1} parent=1 // pred_region
      _
    $region13: #{tpu_custom_call.1} parent=1 // pred_fallthru
      _
    // Predicated region
    $region14: #{tpu_custom_call.1} parent=1 // pred_check
      _
    $region15: #{tpu_custom_call.1} parent=1 // pred_check_branch
      %37 = sbr.rel (0) target = $region17
    $region16: #{tpu_custom_call.1} parent=1 // pred_region
      _
    $region17: #{tpu_custom_call.1} parent=1 // pred_fallthru
      _
    // Predicated region
    $region18: #{tpu_custom_call.1} parent=1 // pred_check
      _
    $region19: #{tpu_custom_call.1} parent=1 // pred_check_branch
      %39 = sbr.rel (0) target = $region21
    $region20: #{tpu_custom_call.1} parent=1 // pred_region
      %40 = dma.done [#allocation3], 128
    $region21: #{tpu_custom_call.1} parent=1 // pred_fallthru
      _
    // Predicated region
    $region22: #{tpu_custom_call.1} parent=1 // pred_check
      _
    $region23: #{tpu_custom_call.1} parent=1 // pred_check_branch
      %42 = sbr.rel (0) target = $region25
    $region24: #{tpu_custom_call.1} parent=1 // pred_region
      %43 = dma.done [#allocation6], 512
    $region25: #{tpu_custom_call.1} parent=1 // pred_fallthru
      _
    %v44 = vld [vmem:[#allocation2] sm:$0xff]
    %v45 = vld [vmem:[#allocation5] sm:$0xff]
    %v46 = vld [vmem:[#allocation5 + $0x8] sm:$0xff]
    %v47 = vld [vmem:[#allocation5 + $0x10] sm:$0xff]
    %v48 = vld [vmem:[#allocation5 + $0x18] sm:$0xff]
    %v49 = vld [vmem:[%s2] sm:$0x3]
    %v50 = vlaneseq
    %v51 = vshrl.u32 %v50, 7
    %v52 = vsub.s32 0, %v51
    %v53 = vrot.slane %v49, %v52
    %vm54 = vcmask 261120
    %v56 = vsel %vm54, %v44, 0
    %58 = vmatprep.subr.mxu0 0.0
    %59 = vmatpush1.msra.mxu0 %v45
    %60 = vmatprep.subr.mxu0 0.0
    %61 = vmatpush1.msra.mxu0 %v46
    %62 = vmatprep.subr.mxu0 0.0
    %63 = vmatpush1.msra.mxu0 %v47
    %64 = vmatprep.subr.mxu0 0.0
    %65 = vmatpush1.msra.mxu0 %v48
    %66 = vmatprep.subr.mxu0 0.0
    %67 = vmatpush1.msra.mxu0 0.0
    %68 = vmatprep.subr.mxu0 0.0
    %69 = vmatpush1.msra.mxu0 0.0
    %70 = vmatprep.subr.mxu0 0.0
    %71 = vmatpush1.msra.mxu0 0.0
    %72 = vmatprep.subr.mxu0 0.0
    %73 = vmatpush1.msra.mxu0 0.0
    %74 = vmatprep.subr.mxu0 0.0
    %75 = vmatpush1.msra.mxu0 0.0
    %76 = vmatprep.subr.mxu0 0.0
    %77 = vmatpush1.msra.mxu0 0.0
    %78 = vmatprep.subr.mxu0 0.0
    %79 = vmatpush1.msra.mxu0 0.0
    %80 = vmatprep.subr.mxu0 0.0
    %81 = vmatpush1.msra.mxu0 0.0
    %82 = vmatprep.subr.mxu0 0.0
    %83 = vmatpush1.msra.mxu0 0.0
    %84 = vmatprep.subr.mxu0 0.0
    %85 = vmatpush1.msra.mxu0 0.0
    %86 = vmatprep.subr.mxu0 0.0
    %87 = vmatpush1.msra.mxu0 0.0
    %88 = vmatprep.subr.mxu0 0.0
    %89 = vmatpush1.msra.mxu0 0.0
    %90 = vmatprep.subr.mxu0 0.0
    %91 = vmatpush1.msra.mxu0 0.0
    %92 = vmatprep.subr.mxu0 0.0
    %93 = vmatpush1.msra.mxu0 0.0
    %94 = vmatprep.subr.mxu0 0.0
    %95 = vmatpush1.msra.mxu0 0.0
    %96 = vmatprep.subr.mxu0 0.0
    %97 = vmatpush1.msra.mxu0 0.0
    %98 = vmatprep.subr.mxu0 0.0
    %99 = vmatpush1.msra.mxu0 0.0
    %100 = vmatprep.subr.mxu0 0.0
    %101 = vmatpush1.msra.mxu0 0.0
    %102 = vmatprep.subr.mxu0 0.0
    %103 = vmatpush1.msra.mxu0 0.0
    %104 = vmatprep.subr.mxu0 0.0
    %105 = vmatpush1.msra.mxu0 0.0
    %106 = vmatprep.subr.mxu0 0.0
    %107 = vmatpush1.msra.mxu0 0.0
    %108 = vmatprep.subr.mxu0 0.0
    %109 = vmatpush1.msra.mxu0 0.0
    %110 = vmatprep.subr.mxu0 0.0
    %111 = vmatpush1.msra.mxu0 0.0
    %112 = vmatprep.subr.mxu0 0.0
    %113 = vmatpush1.msra.mxu0 0.0
    %114 = vmatprep.subr.mxu0 0.0
    %115 = vmatpush1.msra.mxu0 0.0
    %116 = vmatprep.subr.mxu0 0.0
    %117 = vmatpush1.msra.mxu0 0.0
    %118 = vmatprep.subr.mxu0 0.0
    %119 = vmatpush1.msra.mxu0 0.0
    %120 = vmatprep.subr.mxu0 0.0
    %121 = vmatpush1.msra.mxu0 0.0
    %122 = vmatprep.mubr.f32.mxu0 0.0
    %123 = vmatmul.mubr.f32.gmra.mrb[0].mxu0 %v56
    %v124 = vpop.f32.mrb[0].mxu0
    %v125 = vadd.f32 %v53, %v124
    %v126 = vpop.f32.mrb[0].mxu0
    %127 = vdwg.mxu0
    %v128 = vtanh.pop %v125
    %v129 = vld [vmem:[%s3] sm:$0xff]
    %v130 = vlaneseq
    %v131 = vshrl.u32 %v130, 7
    %v132 = vsub.s32 1, %v131
    %v133 = vrot.slane %v49, %v132
    %v134 = vmul.f32 %v128, %v133
    %v135 = vadd.f32 %v129, %v134
    %137 = vrot.lane.b32.xlu0 %v134, 120
    %v138 = vpop.permute.xlu0 %137
    %v140 = vadd.f32 %v135, %v138
    %141 = vrot.lane.b32.xlu0 %v134, 112
    %v142 = vpop.permute.xlu0 %141
    %v144 = vadd.f32 %v140, %v142
    %145 = vrot.lane.b32.xlu0 %v134, 104
    %v146 = vpop.permute.xlu0 %145
    %v148 = vadd.f32 %v144, %v146
    %149 = vrot.lane.b32.xlu0 %v134, 96
    %v150 = vpop.permute.xlu0 %149
    %v152 = vadd.f32 %v148, %v150
    %153 = vrot.lane.b32.xlu0 %v134, 88
    %v154 = vpop.permute.xlu0 %153
    %v156 = vadd.f32 %v152, %v154
    %157 = vrot.lane.b32.xlu0 %v134, 80
    %v158 = vpop.permute.xlu0 %157
    %v160 = vadd.f32 %v156, %v158
    %161 = vrot.lane.b32.xlu0 %v134, 72
    %v162 = vpop.permute.xlu0 %161
    %v164 = vadd.f32 %v160, %v162
    %vm165 = vcmask 64512
    %166 = vst.msk [vmem:[#allocation7] sm:$0xff] %vm165, %v164
    // Predicated region
    $region26: #{tpu_custom_call.1} parent=1 // pred_check
      _
    $region27: #{tpu_custom_call.1} parent=1 // pred_check_branch
      %168 = sbr.rel (0) target = $region29
    $region28: #{tpu_custom_call.1} parent=1 // pred_region
      %s170 = ssub.s32 128, 128
      %171 = vsyncadd [#allocation4], %s170
      %s173 = sshll.u32 [#allocation7], 4
      %s174 = int_to_ptr.vmem [resolvable:$true] %s173
      %176 = dma.vmem_to_hbm [thread:$0]  %s174, 128, %s4, [#allocation4]
    $region29: #{tpu_custom_call.1} parent=1 // pred_fallthru
      _
    // Predicated region
    $region30: #{tpu_custom_call.1} parent=1 // pred_check
      _
    $region31: #{tpu_custom_call.1} parent=1 // pred_check_branch
      %178 = sbr.rel (0) target = $region33
    $region32: #{tpu_custom_call.1} parent=1 // pred_region
      %179 = dma.done [#allocation4], 128
    $region33: #{tpu_custom_call.1} parent=1 // pred_fallthru
      _
    %180 = vsyncpa [#allocation3], 1
    %181 = vsyncpa [#allocation6], 1
    %182 = vsyncpa [#allocation4], 1

</llo_original>
